<compile_context>
chip_gen: v6e
topology: v6e:2x2x1
jax: 0.10.0
libtpu: 0.0.40
codegen_flags: <defaults>
</compile_context>

<pallas_src>
import functools

import jax
import jax.numpy as jnp
from jax.experimental import pallas as pl
from jax.experimental.pallas import tpu as pltpu


def _round_up(x, m):
    return (x + m - 1) // m * m


# ------------------------------------------------------------------ pass 1 --
def _proj_kernel(x_ref, w_ref, a_ref, h_ref, f_ref):
    # h = x @ W  (f32 accumulate);  f = h @ [a1 | a2]  -> (tile, 2)
    h = jnp.dot(x_ref[...], w_ref[...], preferred_element_type=jnp.float32)
    f_ref[...] = jnp.dot(h, a_ref[...], preferred_element_type=jnp.float32)
    h_ref[...] = h.astype(h_ref.dtype)


# ------------------------------------------------------------------ pass 2 --
def _gat_attn_kernel(f1_ref, f2_ref, adj_ref, h_ref, out_ref,
                     m_sc, l_sc, acc_sc, *, alpha, n_real, block_n, mask_cols):
    ki = pl.program_id(1)

    @pl.when(ki == 0)
    def _init():
        m_sc[...] = jnp.full_like(m_sc, -jnp.inf)
        l_sc[...] = jnp.zeros_like(l_sc)
        acc_sc[...] = jnp.zeros_like(acc_sc)

    # scores for this (tq, tk) tile: e_ij = f1_i + f2_j   (pure VPU broadcast)
    e = f1_ref[...] + f2_ref[...]                    # (tq,1)+(1,tk) -> (tq,tk)
    e = jnp.where(e > 0.0, e, alpha * e)             # LeakyReLU
    e = jnp.where(adj_ref[...] > 0, e, -9.0e15)      # adjacency mask (scalar)
    if mask_cols:
        # padded key columns must contribute exactly zero probability
        col = ki * block_n + jax.lax.broadcasted_iota(
            jnp.int32, (1, block_n), 1)
        e = jnp.where(col < n_real, e, -jnp.inf)

    # online-softmax update
    m_prev = m_sc[...]
    m_new = jnp.maximum(m_prev, jnp.max(e, axis=1, keepdims=True))
    corr = jnp.exp(m_prev - m_new)
    p = jnp.exp(e - m_new)                           # f32
    l_sc[...] = corr * l_sc[...] + jnp.sum(p, axis=1, keepdims=True)
    acc_sc[...] = corr * acc_sc[...] + jnp.dot(
        p.astype(h_ref.dtype), h_ref[...], preferred_element_type=jnp.float32)
    m_sc[...] = m_new

    @pl.when(ki == pl.num_programs(1) - 1)
    def _finalize():
        inv_l = pl.reciprocal(l_sc[...], approx=True)
        out_ref[...] = (acc_sc[...] * inv_l).astype(out_ref.dtype)


# ----------------------------------------------------------------- wrapper --
def gat_forward(x, W, a, adj, *, alpha, block_n=128):
    """GAT forward.  x:(N,F_in)  W:(F_in,F_out)  a:(2*F_out,1)  adj:(N,N)."""
    N, F_in = x.shape
    F_out = W.shape[1]
    F_pad = _round_up(F_out, 128)     # lane-dense h / output
    N_pad = _round_up(N, block_n)     # uniform grid

    # wrapper-side padding / repacking (cheap, outside the hot loop)
    x_p = jnp.pad(x, ((0, N_pad - N), (0, 0)))
    W_p = jnp.pad(W, ((0, 0), (0, F_pad - F_out)))
    a1 = jnp.pad(a[:F_out, 0], (0, F_pad - F_out))
    a2 = jnp.pad(a[F_out:, 0], (0, F_pad - F_out))
    a_pack = jnp.stack([a1, a2], axis=1)                      # (F_pad, 2)
    adj_i8 = jnp.pad((adj > 0).astype(jnp.int8),
                     ((0, N_pad - N), (0, N_pad - N)))        # int8 mask bits

    # -------- pass 1: h (bf16) and f = [f1|f2] (f32), computed once --------
    h, f = pl.pallas_call(
        _proj_kernel,
        out_shape=(jax.ShapeDtypeStruct((N_pad, F_pad), jnp.bfloat16),
                   jax.ShapeDtypeStruct((N_pad, 2), jnp.float32)),
        grid_spec=pltpu.PrefetchScalarGridSpec(
            num_scalar_prefetch=0,
            grid=(N_pad // block_n,),
            in_specs=[pl.BlockSpec((block_n, F_in), lambda i: (i, 0)),
                      pl.BlockSpec((F_in, F_pad), lambda i: (0, 0)),
                      pl.BlockSpec((F_pad, 2), lambda i: (0, 0))],
            out_specs=(pl.BlockSpec((block_n, F_pad), lambda i: (i, 0)),
                       pl.BlockSpec((block_n, 2), lambda i: (i, 0)))),
        compiler_params=pltpu.CompilerParams(
            dimension_semantics=("parallel",)),
    )(x_p, W_p, a_pack)

    f1 = f[:, 0:1]                 # (N_pad, 1)  query-side projection
    f2_row = f[:, 1][None, :]      # (1, N_pad)  key-side, lane-major row

    # -------- pass 2: tiled online-softmax attention ------------------------
    kernel = functools.partial(
        _gat_attn_kernel, alpha=alpha, n_real=N, block_n=block_n,
        mask_cols=(N_pad != N))
    out = pl.pallas_call(
        kernel,
        out_shape=jax.ShapeDtypeStruct((N_pad, F_pad), x.dtype),
        grid_spec=pltpu.PrefetchScalarGridSpec(
            num_scalar_prefetch=0,
            grid=(N_pad // block_n, N_pad // block_n),
            in_specs=[
                pl.BlockSpec((block_n, 1), lambda qi, ki: (qi, 0)),        # f1
                pl.BlockSpec((1, block_n), lambda qi, ki: (0, ki)),        # f2
                pl.BlockSpec((block_n, block_n), lambda qi, ki: (qi, ki)),  # adj
                pl.BlockSpec((block_n, F_pad), lambda qi, ki: (ki, 0)),     # h
            ],
            out_specs=pl.BlockSpec((block_n, F_pad), lambda qi, ki: (qi, 0)),
            scratch_shapes=[pltpu.VMEM((block_n, 1), jnp.float32),      # m
                            pltpu.VMEM((block_n, 1), jnp.float32),      # l
                            pltpu.VMEM((block_n, F_pad), jnp.float32)]),  # acc
        compiler_params=pltpu.CompilerParams(
            dimension_semantics=("parallel", "arbitrary"),
            vmem_limit_bytes=48 * 1024 * 1024),
    )(f1, f2_row, adj_i8, h)

    return out[:N, :F_out]


def _xavier_uniform(key, shape, gain):
    fan_in, fan_out = shape
    bound = gain * (6.0 / (fan_in + fan_out)) ** 0.5
    return jax.random.uniform(key, shape, jnp.float32, -bound, bound)


if __name__ == "__main__":
    # Small, deterministic problem: N=8 nodes, in_features=16, out_features=32.
    N, F_in, F_out = 8, 16, 32
    alpha = 0.2  # LeakyReLU negative slope

    key = jax.random.PRNGKey(0)
    k_x, k_w, k_a, k_adj = jax.random.split(key, 4)

    x = jax.random.normal(k_x, (N, F_in), jnp.float32)
    W = _xavier_uniform(k_w, (F_in, F_out), gain=1.414)
    a = _xavier_uniform(k_a, (2 * F_out, 1), gain=1.414)

    # Random sparse adjacency with self-loops, float like torch adj tensors.
    adj = (jax.random.uniform(k_adj, (N, N)) > 0.5).astype(jnp.float32)
    adj = jnp.maximum(adj, jnp.eye(N, dtype=jnp.float32))

    out = gat_forward(x, W, a, adj, alpha=alpha)
    out = jax.block_until_ready(out)

    # Pure-JAX reference (same math as the PyTorch module, eval mode, f32).
    h = x @ W
    e = h @ a[:F_out, :] + (h @ a[F_out:, :]).T
    e = jnp.where(e > 0, e, alpha * e)
    masked = jnp.where(adj > 0, e, jnp.full_like(e, -9.0e15))
    att = jax.nn.softmax(masked, axis=1)
    ref = att @ h

    # Kernel feeds the MXU bf16 (with f32 accumulation) -> loose-ish tolerance.
    assert out.shape == ref.shape
    assert jnp.allclose(out, ref, atol=5e-2, rtol=5e-2), "mismatch vs reference"

    print("KERNEL_OK")
</pallas_src>

<mosaic_0001>
module attributes {stable_mosaic.version = 11 : i64} {
  func.func @_proj_kernel(%arg0: i32, %arg1: memref<128x16xf32, #tpu.memory_space<vmem>>, %arg2: memref<16x128xf32, #tpu.memory_space<vmem>>, %arg3: memref<128x2xf32, #tpu.memory_space<vmem>>, %arg4: memref<128x128xbf16, #tpu.memory_space<vmem>>, %arg5: memref<128x2xf32, #tpu.memory_space<vmem>>) attributes {dimension_semantics = [#tpu.dimension_semantics<parallel>], iteration_bounds = array<i64: 1>, scalar_prefetch = 0 : i64, scratch_operands = 0 : i64, tpu.core_type = #tpu.core_type<tc>, window_params = [{transform_indices = @transform_0, window_bounds = array<i64: 128, 16>}, {pipeline_mode = #tpu.pipeline_mode<synchronous>, transform_indices = @transform_1, window_bounds = array<i64: 16, 128>}, {pipeline_mode = #tpu.pipeline_mode<synchronous>, transform_indices = @transform_2, window_bounds = array<i64: 128, 2>}, {transform_indices = @transform_3, window_bounds = array<i64: 128, 128>}, {transform_indices = @transform_4, window_bounds = array<i64: 128, 2>}]} {
    %c0 = arith.constant 0 : index
    %c0_0 = arith.constant 0 : index
    %0 = vector.load %arg1[%c0, %c0_0] : memref<128x16xf32, #tpu.memory_space<vmem>>, vector<128x16xf32>
    %c0_1 = arith.constant 0 : index
    %c0_2 = arith.constant 0 : index
    %1 = vector.load %arg2[%c0_1, %c0_2] : memref<16x128xf32, #tpu.memory_space<vmem>>, vector<16x128xf32>
    %cst = arith.constant dense<0.000000e+00> : vector<128x128xf32>
    %2 = tpu.matmul %0, %1, %cst {dimension_numbers = #tpu.dot_dimension_numbers<[1], [0], [0], [1], [0, 0, 1, 1], [], []>} : vector<128x16xf32>, vector<16x128xf32>, vector<128x128xf32> -> vector<128x128xf32>
    %c0_3 = arith.constant 0 : index
    %c0_4 = arith.constant 0 : index
    %3 = vector.load %arg3[%c0_3, %c0_4] : memref<128x2xf32, #tpu.memory_space<vmem>>, vector<128x2xf32>
    %cst_5 = arith.constant dense<0.000000e+00> : vector<128x2xf32>
    %4 = tpu.matmul %2, %3, %cst_5 {dimension_numbers = #tpu.dot_dimension_numbers<[1], [0], [0], [1], [0, 0, 1, 1], [], []>} : vector<128x128xf32>, vector<128x2xf32>, vector<128x2xf32> -> vector<128x2xf32>
    %c0_6 = arith.constant 0 : index
    %c0_7 = arith.constant 0 : index
    %5 = vector.load %arg5[%c0_6, %c0_7] : memref<128x2xf32, #tpu.memory_space<vmem>>, vector<128x2xf32>
    tpu.vector_store %arg5[%c0_6, %c0_7], %4 {strides = array<i32>} : memref<128x2xf32, #tpu.memory_space<vmem>>, vector<128x2xf32>,
    %6 = arith.truncf %2 : vector<128x128xf32> to vector<128x128xbf16>
    %c0_8 = arith.constant 0 : index
    %c0_9 = arith.constant 0 : index
    %7 = vector.load %arg4[%c0_8, %c0_9] : memref<128x128xbf16, #tpu.memory_space<vmem>>, vector<128x128xbf16>
    tpu.vector_store %arg4[%c0_8, %c0_9], %6 {strides = array<i32>} : memref<128x128xbf16, #tpu.memory_space<vmem>>, vector<128x128xbf16>,
    return
  }
  func.func @transform_0(%arg0: i32) -> (i32, i32) {
    %c0_i32 = arith.constant 0 : i32
    %c0_i32_0 = arith.constant 0 : i32
    return %arg0, %c0_i32 : i32, i32
  }
  func.func @transform_1(%arg0: i32) -> (i32, i32) {
    %c0_i32 = arith.constant 0 : i32
    %c0_i32_0 = arith.constant 0 : i32
    %c0_i32_1 = arith.constant 0 : i32
    return %c0_i32, %c0_i32_0 : i32, i32
  }
  func.func @transform_2(%arg0: i32) -> (i32, i32) {
    %c0_i32 = arith.constant 0 : i32
    %c0_i32_0 = arith.constant 0 : i32
    %c0_i32_1 = arith.constant 0 : i32
    return %c0_i32, %c0_i32_0 : i32, i32
  }
  func.func @transform_3(%arg0: i32) -> (i32, i32) {
    %c0_i32 = arith.constant 0 : i32
    %c0_i32_0 = arith.constant 0 : i32
    return %arg0, %c0_i32 : i32, i32
  }
  func.func @transform_4(%arg0: i32) -> (i32, i32) {
    %c0_i32 = arith.constant 0 : i32
    %c0_i32_0 = arith.constant 0 : i32
    return %arg0, %c0_i32 : i32, i32
  }
}

</mosaic_0001>

<llo_original>
// kernel: tpu_custom_call.1
$region0: #{tpu_custom_call.1}
  #allocation0 [shape = 'u32[]', space=smem, size = 0x4, offset = 0x4, fixed_abs, tag = 'smem constant byte address 0x4 - core index']
  #allocation1 [shape = 'u32[144,128]{1,0:T(1,128)}', space=vmem, size = 0x12000, scoped, tag = 'internal scratch']
  %s0 = inlined_call_operand.vmem [shape: f32[128,16], index: 0, kind: input, shape index: {}]
  %s1 = inlined_call_operand.vmem [shape: f32[16,128], index: 1, kind: input, shape index: {}]
  %s2 = inlined_call_operand.vmem [shape: f32[128,2], index: 2, kind: input, shape index: {}]
  %s3 = inlined_call_operand.hbm [shape: bf16[128,128], index: 3, kind: output, shape index: {0}]
  %s4 = inlined_call_operand.vmem [shape: f32[128,2], index: 4, kind: output, shape index: {1}]
  %5 = xla_tuple %s3, %s4
  %s6 = sld [smem:[#allocation0]]
  $region30: #{tpu_custom_call.1} parent=0
    _
  %s8 = ssub.s32 1, %s6
  %s9 = scalar_select 0, %s8, %s6
  $region1: #{tpu_custom_call.1} parent=0
    #allocation2 [shape = 'u8[32768]{0}', space=vmem, size = 0x8000, scoped, tag = 'output window, operand 0, single buffered']
    #allocation3 [shape = 's32[1]{0}', space=sflag, size = 0x4, scoped, tag = 'scoped memory for tpu_custom_call.1']
    %10 = vsyncpa [#allocation3], 0
    // Predicated region
    $region2: #{tpu_custom_call.1} parent=1 // pred_check
      _
    $region3: #{tpu_custom_call.1} parent=1 // pred_check_branch
      %12 = sbr.rel (0) target = $region5
    $region4: #{tpu_custom_call.1} parent=1 // pred_region
      _
    $region5: #{tpu_custom_call.1} parent=1 // pred_fallthru
      _
    // Predicated region
    $region6: #{tpu_custom_call.1} parent=1 // pred_check
      _
    $region7: #{tpu_custom_call.1} parent=1 // pred_check_branch
      %14 = sbr.rel (0) target = $region9
    $region8: #{tpu_custom_call.1} parent=1 // pred_region
      _
    $region9: #{tpu_custom_call.1} parent=1 // pred_fallthru
      _
    // Predicated region
    $region10: #{tpu_custom_call.1} parent=1 // pred_check
      _
    $region11: #{tpu_custom_call.1} parent=1 // pred_check_branch
      %16 = sbr.rel (0) target = $region13
    $region12: #{tpu_custom_call.1} parent=1 // pred_region
      _
    $region13: #{tpu_custom_call.1} parent=1 // pred_fallthru
      _
    %v17 = vld [vmem:[%s0] sm:$0xff]
    %v18 = vld [vmem:[%s0 + $0x8] sm:$0xff]
    %v19 = vld [vmem:[%s0 + $0x10] sm:$0xff]
    %v20 = vld [vmem:[%s0 + $0x18] sm:$0xff]
    %v21 = vld [vmem:[%s0 + $0x20] sm:$0xff]
    %v22 = vld [vmem:[%s0 + $0x28] sm:$0xff]
    %v23 = vld [vmem:[%s0 + $0x30] sm:$0xff]
    %v24 = vld [vmem:[%s0 + $0x38] sm:$0xff]
    %v25 = vld [vmem:[%s0 + $0x40] sm:$0xff]
    %v26 = vld [vmem:[%s0 + $0x48] sm:$0xff]
    %v27 = vld [vmem:[%s0 + $0x50] sm:$0xff]
    %v28 = vld [vmem:[%s0 + $0x58] sm:$0xff]
    %v29 = vld [vmem:[%s0 + $0x60] sm:$0xff]
    %v30 = vld [vmem:[%s0 + $0x68] sm:$0xff]
    %v31 = vld [vmem:[%s0 + $0x70] sm:$0xff]
    %v32 = vld [vmem:[%s0 + $0x78] sm:$0xff]
    %v33 = vld [vmem:[%s1] sm:$0xff]
    %v34 = vld [vmem:[%s1 + $0x8] sm:$0xff]
    %vm35 = vcmask 130048
    %v37 = vsel %vm35, %v17, 0
    %v40 = vsel %vm35, %v18, 0
    %v43 = vsel %vm35, %v19, 0
    %v46 = vsel %vm35, %v20, 0
    %v49 = vsel %vm35, %v21, 0
    %v52 = vsel %vm35, %v22, 0
    %v55 = vsel %vm35, %v23, 0
    %v58 = vsel %vm35, %v24, 0
    %v61 = vsel %vm35, %v25, 0
    %v64 = vsel %vm35, %v26, 0
    %v67 = vsel %vm35, %v27, 0
    %v70 = vsel %vm35, %v28, 0
    %v73 = vsel %vm35, %v29, 0
    %v76 = vsel %vm35, %v30, 0
    %v79 = vsel %vm35, %v31, 0
    %v82 = vsel %vm35, %v32, 0
    %84 = vmatprep.subr.mxu0 0.0
    %85 = vmatpush1.msra.mxu0 0.0
    %86 = vmatprep.subr.mxu0 0.0
    %87 = vmatpush1.msra.mxu0 0.0
    %88 = vmatprep.subr.mxu0 0.0
    %89 = vmatpush1.msra.mxu0 0.0
    %90 = vmatprep.subr.mxu0 0.0
    %91 = vmatpush1.msra.mxu0 0.0
    %92 = vmatprep.subr.mxu0 0.0
    %93 = vmatpush1.msra.mxu0 0.0
    %94 = vmatprep.subr.mxu0 0.0
    %95 = vmatpush1.msra.mxu0 0.0
    %96 = vmatprep.subr.mxu0 0.0
    %97 = vmatpush1.msra.mxu0 0.0
    %98 = vmatprep.subr.mxu0 0.0
    %99 = vmatpush1.msra.mxu0 0.0
    %100 = vmatprep.subr.mxu0 0.0
    %101 = vmatpush1.msra.mxu0 0.0
    %102 = vmatprep.subr.mxu0 0.0
    %103 = vmatpush1.msra.mxu0 0.0
    %104 = vmatprep.subr.mxu0 0.0
    %105 = vmatpush1.msra.mxu0 0.0
    %106 = vmatprep.subr.mxu0 0.0
    %107 = vmatpush1.msra.mxu0 0.0
    %108 = vmatprep.subr.mxu0 0.0
    %109 = vmatpush1.msra.mxu0 0.0
    %110 = vmatprep.subr.mxu0 0.0
    %111 = vmatpush1.msra.mxu0 0.0
    %112 = vmatprep.subr.mxu0 0.0
    %113 = vmatpush1.msra.mxu0 %v34
    %114 = vmatprep.subr.mxu0 0.0
    %115 = vmatpush1.msra.mxu0 %v33
    %116 = vmatprep.subr.mxu0 0.0
    %117 = vmatpush2.msra.mxu0 0.0
    %118 = vmatprep.subr.mxu0 0.0
    %119 = vmatpush2.msra.mxu0 0.0
    %120 = vmatprep.subr.mxu0 0.0
    %121 = vmatpush2.msra.mxu0 0.0
    %122 = vmatprep.subr.mxu0 0.0
    %123 = vmatpush2.msra.mxu0 0.0
    %124 = vmatprep.subr.mxu0 0.0
    %125 = vmatpush2.msra.mxu0 0.0
    %126 = vmatprep.subr.mxu0 0.0
    %127 = vmatpush2.msra.mxu0 0.0
    %128 = vmatprep.subr.mxu0 0.0
    %129 = vmatpush2.msra.mxu0 0.0
    %130 = vmatprep.subr.mxu0 0.0
    %131 = vmatpush2.msra.mxu0 0.0
    %132 = vmatprep.subr.mxu0 0.0
    %133 = vmatpush2.msra.mxu0 0.0
    %134 = vmatprep.subr.mxu0 0.0
    %135 = vmatpush2.msra.mxu0 0.0
    %136 = vmatprep.subr.mxu0 0.0
    %137 = vmatpush2.msra.mxu0 0.0
    %138 = vmatprep.subr.mxu0 0.0
    %139 = vmatpush2.msra.mxu0 0.0
    %140 = vmatprep.subr.mxu0 0.0
    %141 = vmatpush2.msra.mxu0 0.0
    %142 = vmatprep.subr.mxu0 0.0
    %143 = vmatpush2.msra.mxu0 0.0
    %144 = vmatprep.subr.mxu0 0.0
    %145 = vmatpush2.msra.mxu0 0.0
    %146 = vmatprep.subr.mxu0 0.0
    %147 = vmatpush2.msra.mxu0 0.0
    %148 = vmatprep.mubr.f32.mxu0 0.0
    %149 = vmatmul.mubr.f32.gmra.mxu0 %v37
    %v150 = vpop.f32.mrf.mxu0
    %v151 = vadd.f32 0.0, %v150
    %v152 = vpop.f32.mrf.mxu0
    %153 = vmatprep.mubr.f32.mxu0 0.0
    %154 = vmatmul.mubr.f32.gmra.mxu0 %v40
    %v155 = vpop.f32.mrf.mxu0
    %v156 = vadd.f32 0.0, %v155
    %v157 = vpop.f32.mrf.mxu0
    %158 = vmatprep.mubr.f32.mxu0 0.0
    %159 = vmatmul.mubr.f32.gmra.mxu0 %v43
    %v160 = vpop.f32.mrf.mxu0
    %v161 = vadd.f32 0.0, %v160
    %v162 = vpop.f32.mrf.mxu0
    %163 = vmatprep.mubr.f32.mxu0 0.0
    %164 = vmatmul.mubr.f32.gmra.mxu0 %v46
    %v165 = vpop.f32.mrf.mxu0
    %v166 = vadd.f32 0.0, %v165
    %v167 = vpop.f32.mrf.mxu0
    %168 = vmatprep.mubr.f32.mxu0 0.0
    %169 = vmatmul.mubr.f32.gmra.mxu0 %v49
    %v170 = vpop.f32.mrf.mxu0
    %v171 = vadd.f32 0.0, %v170
    %v172 = vpop.f32.mrf.mxu0
    %173 = vmatprep.mubr.f32.mxu0 0.0
    %174 = vmatmul.mubr.f32.gmra.mxu0 %v52
    %v175 = vpop.f32.mrf.mxu0
    %v176 = vadd.f32 0.0, %v175
    %v177 = vpop.f32.mrf.mxu0
    %178 = vmatprep.mubr.f32.mxu0 0.0
    %179 = vmatmul.mubr.f32.gmra.mxu0 %v55
    %v180 = vpop.f32.mrf.mxu0
    %v181 = vadd.f32 0.0, %v180
    %v182 = vpop.f32.mrf.mxu0
    %183 = vmatprep.mubr.f32.mxu0 0.0
    %184 = vmatmul.mubr.f32.gmra.mxu0 %v58
    %v185 = vpop.f32.mrf.mxu0
    %v186 = vadd.f32 0.0, %v185
    %v187 = vpop.f32.mrf.mxu0
    %188 = vmatprep.mubr.f32.mxu0 0.0
    %189 = vmatmul.mubr.f32.gmra.mxu0 %v61
    %v190 = vpop.f32.mrf.mxu0
    %v191 = vadd.f32 0.0, %v190
    %v192 = vpop.f32.mrf.mxu0
    %193 = vmatprep.mubr.f32.mxu0 0.0
    %194 = vmatmul.mubr.f32.gmra.mxu0 %v64
    %v195 = vpop.f32.mrf.mxu0
    %v196 = vadd.f32 0.0, %v195
    %v197 = vpop.f32.mrf.mxu0
    %198 = vmatprep.mubr.f32.mxu0 0.0
    %199 = vmatmul.mubr.f32.gmra.mxu0 %v67
    %v200 = vpop.f32.mrf.mxu0
    %v201 = vadd.f32 0.0, %v200
    %v202 = vpop.f32.mrf.mxu0
    %203 = vmatprep.mubr.f32.mxu0 0.0
    %204 = vmatmul.mubr.f32.gmra.mxu0 %v70
    %v205 = vpop.f32.mrf.mxu0
    %v206 = vadd.f32 0.0, %v205
    %v207 = vpop.f32.mrf.mxu0
    %208 = vmatprep.mubr.f32.mxu0 0.0
    %209 = vmatmul.mubr.f32.gmra.mxu0 %v73
    %v210 = vpop.f32.mrf.mxu0
    %v211 = vadd.f32 0.0, %v210
    %v212 = vpop.f32.mrf.mxu0
    %213 = vmatprep.mubr.f32.mxu0 0.0
    %214 = vmatmul.mubr.f32.gmra.mxu0 %v76
    %v215 = vpop.f32.mrf.mxu0
    %v216 = vadd.f32 0.0, %v215
    %v217 = vpop.f32.mrf.mxu0
    %218 = vmatprep.mubr.f32.mxu0 0.0
    %219 = vmatmul.mubr.f32.gmra.mxu0 %v79
    %v220 = vpop.f32.mrf.mxu0
    %v221 = vadd.f32 0.0, %v220
    %v222 = vpop.f32.mrf.mxu0
    %223 = vmatprep.mubr.f32.mxu0 0.0
    %224 = vmatmul.mubr.f32.gmra.mxu0 %v82
    %v225 = vpop.f32.mrf.mxu0
    %v226 = vadd.f32 0.0, %v225
    %v227 = vpop.f32.mrf.mxu0
    %228 = vdwg.mxu0
    %v229 = vld [vmem:[%s2] sm:$0xff]
    %v230 = vld [vmem:[%s2 + $0x8] sm:$0xff]
    %v231 = vld [vmem:[%s2 + $0x10] sm:$0xff]
    %v232 = vld [vmem:[%s2 + $0x18] sm:$0xff]
    %v233 = vld [vmem:[%s2 + $0x20] sm:$0xff]
    %v234 = vld [vmem:[%s2 + $0x28] sm:$0xff]
    %v235 = vld [vmem:[%s2 + $0x30] sm:$0xff]
    %v236 = vld [vmem:[%s2 + $0x38] sm:$0xff]
    %v237 = vld [vmem:[%s2 + $0x40] sm:$0xff]
    %v238 = vld [vmem:[%s2 + $0x48] sm:$0xff]
    %v239 = vld [vmem:[%s2 + $0x50] sm:$0xff]
    %v240 = vld [vmem:[%s2 + $0x58] sm:$0xff]
    %v241 = vld [vmem:[%s2 + $0x60] sm:$0xff]
    %v242 = vld [vmem:[%s2 + $0x68] sm:$0xff]
    %v243 = vld [vmem:[%s2 + $0x70] sm:$0xff]
    %v244 = vld [vmem:[%s2 + $0x78] sm:$0xff]
    %245 = vmatprep.subr.mxu0 0.0
    %246 = vmatpush1.msra.mxu0 %v244
    %247 = vmatprep.subr.mxu0 0.0
    %248 = vmatpush1.msra.mxu0 %v243
    %249 = vmatprep.subr.mxu0 0.0
    %250 = vmatpush1.msra.mxu0 %v242
    %251 = vmatprep.subr.mxu0 0.0
    %252 = vmatpush1.msra.mxu0 %v241
    %253 = vmatprep.subr.mxu0 0.0
    %254 = vmatpush1.msra.mxu0 %v240
    %255 = vmatprep.subr.mxu0 0.0
    %256 = vmatpush1.msra.mxu0 %v239
    %257 = vmatprep.subr.mxu0 0.0
    %258 = vmatpush1.msra.mxu0 %v238
    %259 = vmatprep.subr.mxu0 0.0
    %260 = vmatpush1.msra.mxu0 %v237
    %261 = vmatprep.subr.mxu0 0.0
    %262 = vmatpush1.msra.mxu0 %v236
    %263 = vmatprep.subr.mxu0 0.0
    %264 = vmatpush1.msra.mxu0 %v235
    %265 = vmatprep.subr.mxu0 0.0
    %266 = vmatpush1.msra.mxu0 %v234
    %267 = vmatprep.subr.mxu0 0.0
    %268 = vmatpush1.msra.mxu0 %v233
    %269 = vmatprep.subr.mxu0 0.0
    %270 = vmatpush1.msra.mxu0 %v232
    %271 = vmatprep.subr.mxu0 0.0
    %272 = vmatpush1.msra.mxu0 %v231
    %273 = vmatprep.subr.mxu0 0.0
    %274 = vmatpush1.msra.mxu0 %v230
    %275 = vmatprep.subr.mxu0 0.0
    %276 = vmatpush1.msra.mxu0 %v229
    %277 = vmatprep.subr.mxu0 0.0
    %278 = vmatpush2.msra.mxu0 0.0
    %279 = vmatprep.subr.mxu0 0.0
    %280 = vmatpush2.msra.mxu0 0.0
    %281 = vmatprep.subr.mxu0 0.0
    %282 = vmatpush2.msra.mxu0 0.0
    %283 = vmatprep.subr.mxu0 0.0
    %284 = vmatpush2.msra.mxu0 0.0
    %285 = vmatprep.subr.mxu0 0.0
    %286 = vmatpush2.msra.mxu0 0.0
    %287 = vmatprep.subr.mxu0 0.0
    %288 = vmatpush2.msra.mxu0 0.0
    %289 = vmatprep.subr.mxu0 0.0
    %290 = vmatpush2.msra.mxu0 0.0
    %291 = vmatprep.subr.mxu0 0.0
    %292 = vmatpush2.msra.mxu0 0.0
    %293 = vmatprep.subr.mxu0 0.0
    %294 = vmatpush2.msra.mxu0 0.0
    %295 = vmatprep.subr.mxu0 0.0
    %296 = vmatpush2.msra.mxu0 0.0
    %297 = vmatprep.subr.mxu0 0.0
    %298 = vmatpush2.msra.mxu0 0.0
    %299 = vmatprep.subr.mxu0 0.0
    %300 = vmatpush2.msra.mxu0 0.0
    %301 = vmatprep.subr.mxu0 0.0
    %302 = vmatpush2.msra.mxu0 0.0
    %303 = vmatprep.subr.mxu0 0.0
    %304 = vmatpush2.msra.mxu0 0.0
    %305 = vmatprep.subr.mxu0 0.0
    %306 = vmatpush2.msra.mxu0 0.0
    %307 = vmatprep.subr.mxu0 0.0
    %308 = vmatpush2.msra.mxu0 0.0
    %309 = vmatprep.mubr.f32.mxu0 0.0
    %310 = vmatmul.mubr.f32.gmra.mxu0 %v151
    %v311 = vpop.f32.mrf.mxu0
    %v312 = vadd.f32 0.0, %v311
    %v313 = vpop.f32.mrf.mxu0
    %314 = vmatprep.mubr.f32.mxu0 0.0
    %315 = vmatmul.mubr.f32.gmra.mxu0 %v156
    %v316 = vpop.f32.mrf.mxu0
    %v317 = vadd.f32 0.0, %v316
    %v318 = vpop.f32.mrf.mxu0
    %319 = vmatprep.mubr.f32.mxu0 0.0
    %320 = vmatmul.mubr.f32.gmra.mxu0 %v161
    %v321 = vpop.f32.mrf.mxu0
    %v322 = vadd.f32 0.0, %v321
    %v323 = vpop.f32.mrf.mxu0
    %324 = vmatprep.mubr.f32.mxu0 0.0
    %325 = vmatmul.mubr.f32.gmra.mxu0 %v166
    %v326 = vpop.f32.mrf.mxu0
    %v327 = vadd.f32 0.0, %v326
    %v328 = vpop.f32.mrf.mxu0
    %329 = vmatprep.mubr.f32.mxu0 0.0
    %330 = vmatmul.mubr.f32.gmra.mxu0 %v171
    %v331 = vpop.f32.mrf.mxu0
    %v332 = vadd.f32 0.0, %v331
    %v333 = vpop.f32.mrf.mxu0
    %334 = vmatprep.mubr.f32.mxu0 0.0
    %335 = vmatmul.mubr.f32.gmra.mxu0 %v176
    %v336 = vpop.f32.mrf.mxu0
    %v337 = vadd.f32 0.0, %v336
    %v338 = vpop.f32.mrf.mxu0
    %339 = vmatprep.mubr.f32.mxu0 0.0
    %340 = vmatmul.mubr.f32.gmra.mxu0 %v181
    %v341 = vpop.f32.mrf.mxu0
    %v342 = vadd.f32 0.0, %v341
    %v343 = vpop.f32.mrf.mxu0
    %344 = vmatprep.mubr.f32.mxu0 0.0
    %345 = vmatmul.mubr.f32.gmra.mxu0 %v186
    %v346 = vpop.f32.mrf.mxu0
    %v347 = vadd.f32 0.0, %v346
    %v348 = vpop.f32.mrf.mxu0
    %349 = vmatprep.mubr.f32.mxu0 0.0
    %350 = vmatmul.mubr.f32.gmra.mxu0 %v191
    %v351 = vpop.f32.mrf.mxu0
    %v352 = vadd.f32 0.0, %v351
    %v353 = vpop.f32.mrf.mxu0
    %354 = vmatprep.mubr.f32.mxu0 0.0
    %355 = vmatmul.mubr.f32.gmra.mxu0 %v196
    %v356 = vpop.f32.mrf.mxu0
    %v357 = vadd.f32 0.0, %v356
    %v358 = vpop.f32.mrf.mxu0
    %359 = vmatprep.mubr.f32.mxu0 0.0
    %360 = vmatmul.mubr.f32.gmra.mxu0 %v201
    %v361 = vpop.f32.mrf.mxu0
    %v362 = vadd.f32 0.0, %v361
    %v363 = vpop.f32.mrf.mxu0
    %364 = vmatprep.mubr.f32.mxu0 0.0
    %365 = vmatmul.mubr.f32.gmra.mxu0 %v206
    %v366 = vpop.f32.mrf.mxu0
    %v367 = vadd.f32 0.0, %v366
    %v368 = vpop.f32.mrf.mxu0
    %369 = vmatprep.mubr.f32.mxu0 0.0
    %370 = vmatmul.mubr.f32.gmra.mxu0 %v211
    %v371 = vpop.f32.mrf.mxu0
    %v372 = vadd.f32 0.0, %v371
    %v373 = vpop.f32.mrf.mxu0
    %374 = vmatprep.mubr.f32.mxu0 0.0
    %375 = vmatmul.mubr.f32.gmra.mxu0 %v216
    %v376 = vpop.f32.mrf.mxu0
    %v377 = vadd.f32 0.0, %v376
    %v378 = vpop.f32.mrf.mxu0
    %379 = vmatprep.mubr.f32.mxu0 0.0
    %380 = vmatmul.mubr.f32.gmra.mxu0 %v221
    %v381 = vpop.f32.mrf.mxu0
    %v382 = vadd.f32 0.0, %v381
    %v383 = vpop.f32.mrf.mxu0
    %384 = vmatprep.mubr.f32.mxu0 0.0
    %385 = vmatmul.mubr.f32.gmra.mxu0 %v226
    %v386 = vpop.f32.mrf.mxu0
    %v387 = vadd.f32 0.0, %v386
    %v388 = vpop.f32.mrf.mxu0
    %389 = vdwg.mxu0
    %vm390 = vcmask 15360
    %391 = vst.msk [vmem:[%s4] sm:$0xff] %vm390, %v312
    %392 = vst.msk [vmem:[%s4 + $0x8] sm:$0xff] %vm390, %v317
    %393 = vst.msk [vmem:[%s4 + $0x10] sm:$0xff] %vm390, %v322
    %394 = vst.msk [vmem:[%s4 + $0x18] sm:$0xff] %vm390, %v327
    %395 = vst.msk [vmem:[%s4 + $0x20] sm:$0xff] %vm390, %v332
    %396 = vst.msk [vmem:[%s4 + $0x28] sm:$0xff] %vm390, %v337
    %397 = vst.msk [vmem:[%s4 + $0x30] sm:$0xff] %vm390, %v342
    %398 = vst.msk [vmem:[%s4 + $0x38] sm:$0xff] %vm390, %v347
    %399 = vst.msk [vmem:[%s4 + $0x40] sm:$0xff] %vm390, %v352
    %400 = vst.msk [vmem:[%s4 + $0x48] sm:$0xff] %vm390, %v357
    %401 = vst.msk [vmem:[%s4 + $0x50] sm:$0xff] %vm390, %v362
    %402 = vst.msk [vmem:[%s4 + $0x58] sm:$0xff] %vm390, %v367
    %403 = vst.msk [vmem:[%s4 + $0x60] sm:$0xff] %vm390, %v372
    %404 = vst.msk [vmem:[%s4 + $0x68] sm:$0xff] %vm390, %v377
    %405 = vst.msk [vmem:[%s4 + $0x70] sm:$0xff] %vm390, %v382
    %406 = vst.msk [vmem:[%s4 + $0x78] sm:$0xff] %vm390, %v387
    %v407 = vpack.c.bf16 %v156, %v151
    %v408 = vpack.c.bf16 %v166, %v161
    %v409 = vpack.c.bf16 %v176, %v171
    %v410 = vpack.c.bf16 %v186, %v181
    %v411 = vpack.c.bf16 %v196, %v191
    %v412 = vpack.c.bf16 %v206, %v201
    %v413 = vpack.c.bf16 %v216, %v211
    %v414 = vpack.c.bf16 %v226, %v221
    %v423 = vunpack.c.l.b16 %v407
    %v424 = vunpack.c.h.b16 %v407
    %v425 = vunpack.c.l.b16 %v408
    %v426 = vunpack.c.h.b16 %v408
    %v427 = vunpack.c.l.b16 %v409
    %v428 = vunpack.c.h.b16 %v409
    %v429 = vunpack.c.l.b16 %v410
    %v430 = vunpack.c.h.b16 %v410
    %v431 = vunpack.c.l.b16 %v411
    %v432 = vunpack.c.h.b16 %v411
    %v433 = vunpack.c.l.b16 %v412
    %v434 = vunpack.c.h.b16 %v412
    %v435 = vunpack.c.l.b16 %v413
    %v436 = vunpack.c.h.b16 %v413
    %v437 = vunpack.c.l.b16 %v414
    %v438 = vunpack.c.h.b16 %v414
    %v439 = vpack.c.b16 %v423, %v423
    %v440 = vpack.c.b16 %v424, %v424
    %v441 = vpack.c.b16 %v425, %v425
    %v442 = vpack.c.b16 %v426, %v426
    %v443 = vpack.c.b16 %v427, %v427
    %v444 = vpack.c.b16 %v428, %v428
    %v445 = vpack.c.b16 %v429, %v429
    %v446 = vpack.c.b16 %v430, %v430
    %v447 = vpack.c.b16 %v431, %v431
    %v448 = vpack.c.b16 %v432, %v432
    %v449 = vpack.c.b16 %v433, %v433
    %v450 = vpack.c.b16 %v434, %v434
    %v451 = vpack.c.b16 %v435, %v435
    %v452 = vpack.c.b16 %v436, %v436
    %v453 = vpack.c.b16 %v437, %v437
    %v454 = vpack.c.b16 %v438, %v438
    %471 = vst [vmem:[#allocation2] sm:$0xf] %v439
    %472 = vst [vmem:[#allocation2 + $0x4] sm:$0xf] %v440
    %473 = vst [vmem:[#allocation2 + $0x8] sm:$0xf] %v441
    %474 = vst [vmem:[#allocation2 + $0xc] sm:$0xf] %v442
    %475 = vst [vmem:[#allocation2 + $0x10] sm:$0xf] %v443
    %476 = vst [vmem:[#allocation2 + $0x14] sm:$0xf] %v444
    %477 = vst [vmem:[#allocation2 + $0x18] sm:$0xf] %v445
    %478 = vst [vmem:[#allocation2 + $0x1c] sm:$0xf] %v446
    %479 = vst [vmem:[#allocation2 + $0x20] sm:$0xf] %v447
    %480 = vst [vmem:[#allocation2 + $0x24] sm:$0xf] %v448
    %481 = vst [vmem:[#allocation2 + $0x28] sm:$0xf] %v449
    %482 = vst [vmem:[#allocation2 + $0x2c] sm:$0xf] %v450
    %483 = vst [vmem:[#allocation2 + $0x30] sm:$0xf] %v451
    %484 = vst [vmem:[#allocation2 + $0x34] sm:$0xf] %v452
    %485 = vst [vmem:[#allocation2 + $0x38] sm:$0xf] %v453
    %486 = vst [vmem:[#allocation2 + $0x3c] sm:$0xf] %v454
    // Predicated region
    $region14: #{tpu_custom_call.1} parent=1 // pred_check
      _
    $region15: #{tpu_custom_call.1} parent=1 // pred_check_branch
      %488 = sbr.rel (0) target = $region17
    $region16: #{tpu_custom_call.1} parent=1 // pred_region
      %s490 = ssub.s32 1024, 1024
      %491 = vsyncadd [#allocation3], %s490
      %s492 = sshll.u32 [#allocation2], 4
      %s493 = int_to_ptr.vmem [resolvable:$true] %s492
      %498 = dma.vmem_to_hbm [thread:$0]  %s493, 1024, %s3, [#allocation3], 64, 64, 4
    $region17: #{tpu_custom_call.1} parent=1 // pred_fallthru
      _
    // Predicated region
    $region18: #{tpu_custom_call.1} parent=1 // pred_check
      _
    $region19: #{tpu_custom_call.1} parent=1 // pred_check_branch
      %500 = sbr.rel (0) target = $region21
    $region20: #{tpu_custom_call.1} parent=1 // pred_region
      _
    $region21: #{tpu_custom_call.1} parent=1 // pred_fallthru
      _
    // Predicated region
    $region22: #{tpu_custom_call.1} parent=1 // pred_check
      _
    $region23: #{tpu_custom_call.1} parent=1 // pred_check_branch
      %502 = sbr.rel (0) target = $region25
    $region24: #{tpu_custom_call.1} parent=1 // pred_region
      %503 = dma.done [#allocation3], 1024
    $region25: #{tpu_custom_call.1} parent=1 // pred_fallthru
      _
    // Predicated region
    $region26: #{tpu_custom_call.1} parent=1 // pred_check
      _
    $region27: #{tpu_custom_call.1} parent=1 // pred_check_branch
      %505 = sbr.rel (0) target = $region29
    $region28: #{tpu_custom_call.1} parent=1 // pred_region
      _
    $region29: #{tpu_custom_call.1} parent=1 // pred_fallthru
      _
    %506 = vsyncpa [#allocation3], 1

</llo_original>
